<compile_context>
chip_gen: v5e
topology: v5e:2x2
jax: 0.10.0
libtpu: 0.0.40
codegen_flags: <defaults>
</compile_context>

<pallas_src>
import jax
import jax.numpy as jnp
from jax.experimental import pallas as pl
from jax.experimental.pallas import tpu as pltpu

_LANE = 512                              # lane-dense last dim (multiple of 128)
_TARGET_BLOCK_BYTES = 4 * 1024 * 1024    # ~4 MiB/block; 4 bufs (dbl-buffered
                                         # in+out) = 16 MiB, fits all chips.


def _copy_kernel(x_ref, o_ref):
    # Pure pass-through: BaseModel.forward defines no computation.
    o_ref[...] = x_ref[...]


def _sublane_multiple(dtype) -> int:
    # Sub-32-bit dtypes pack along sublanes: bf16 -> 16, int8/fp8 -> 32.
    itemsize = jnp.dtype(dtype).itemsize
    return {1: 32, 2: 16}.get(itemsize, 8)


def _pick_row_block(n_rows: int, row_bytes: int, dtype) -> int:
    """Row-block sized to ~_TARGET_BLOCK_BYTES, dtype-aware sublane multiple."""
    sub = _sublane_multiple(dtype)
    target_rows = max(1, _TARGET_BLOCK_BYTES // max(row_bytes, 1))
    block = (target_rows // sub) * sub
    if block < sub or block >= n_rows:
        # Full row extent: block dim == full array dim is always a legal tile.
        return n_rows
    return block


@jax.jit
def pallas_identity_copy(x: jax.Array) -> jax.Array:
    """Explicit materialized copy of `x` through a tiled, lane-dense Pallas kernel."""
    orig_shape = x.shape
    dtype = x.dtype
    total = int(x.size)
    itemsize = jnp.dtype(dtype).itemsize

    if total == 0:
        return x

    # Lane-dense slab when it divides evenly (no pad, no trim).
    if total % _LANE == 0:
        lane = _LANE
        x2d = x.reshape(total // _LANE, _LANE)
    else:
        # Fallback: collapse leading dims, keep the full trailing dim
        # (block dim == full array dim satisfies the tiling constraint).
        if x.ndim >= 2:
            lane = orig_shape[-1]
            x2d = x.reshape(total // lane, lane)
        else:
            lane = total
            x2d = x.reshape(1, total)

    n_rows = x2d.shape[0]
    row_bytes = lane * itemsize
    block_rows = _pick_row_block(n_rows, row_bytes, dtype)
    grid = (pl.cdiv(n_rows, block_rows),)   # ragged last block is masked by Pallas

    out2d = pl.pallas_call(
        _copy_kernel,
        out_shape=jax.ShapeDtypeStruct((n_rows, lane), dtype),
        grid_spec=pltpu.PrefetchScalarGridSpec(
            num_scalar_prefetch=0,
            grid=grid,
            in_specs=[pl.BlockSpec((block_rows, lane), lambda i: (i, 0))],
            out_specs=pl.BlockSpec((block_rows, lane), lambda i: (i, 0)),
        ),
        compiler_params=pltpu.CompilerParams(
            dimension_semantics=("parallel",),
            vmem_limit_bytes=64 << 20,
        ),
        cost_estimate=pl.CostEstimate(
            flops=0,
            transcendentals=0,
            bytes_accessed=2 * total * itemsize,
        ),
    )(x2d)

    return out2d.reshape(orig_shape)


class BaseModelPallas:
    """JAX/Pallas counterpart of aste.models.base_model.BaseModel."""

    def __init__(self, model_name: str):
        self.model_name = model_name
        self.performed_epochs: int = 0
        self.warmup: bool = False
        self.trainable: bool = True
        # BaseModel.__init__ registers no parameters; nothing to initialize.

    def forward(self, x: jax.Array) -> jax.Array:
        # Abstract forward == identity contract.  Short-circuit: returning x
        # costs zero HBM traffic (no kernel launch, no read+write pass).
        return x

    def __call__(self, x: jax.Array) -> jax.Array:
        return self.forward(x)

    def materialize(self, x: jax.Array) -> jax.Array:
        # Explicit Pallas copy kernel, kept for when a fresh buffer is needed.
        return pallas_identity_copy(x)

    # --- bookkeeping methods mirroring the PyTorch module (no tensor compute) ---
    def update_trainable_parameters(self) -> None:
        self.performed_epochs += 1

    def freeze(self) -> None:
        self.trainable = False

    def unfreeze(self) -> None:
        self.trainable = True


if __name__ == "__main__":
    key = jax.random.PRNGKey(0)
    # Small NCHW input consistent with the (abstract) forward signature.
    x = jax.random.normal(key, (2, 4, 16, 16), dtype=jnp.float32)

    model = BaseModelPallas("base_model")

    # 1) forward(): identity short-circuit (the recommended path — zero traffic).
    y_fwd = model(x)
    assert y_fwd is x

    # 2) explicit Pallas copy kernel (lane-dense slab path, f32).
    y = jax.block_until_ready(model.materialize(x))
    assert y.shape == x.shape and y.dtype == x.dtype
    assert bool(jnp.allclose(y, x)), "identity copy mismatch (f32 slab path)"

    # 3) bf16 lane-dense slab path (dtype-aware sublane rounding).
    x_bf = jax.random.normal(jax.random.PRNGKey(1), (2, 8, 64), dtype=jnp.bfloat16)
    y_bf = jax.block_until_ready(pallas_identity_copy(x_bf))
    assert bool(jnp.array_equal(y_bf, x_bf)), "identity copy mismatch (bf16 slab path)"

    # 4) ragged fallback path (last dim not a multiple of 128, no pad/trim).
    x_rg = jax.random.normal(jax.random.PRNGKey(2), (3, 5, 7), dtype=jnp.float32)
    y_rg = jax.block_until_ready(pallas_identity_copy(x_rg))
    assert bool(jnp.allclose(y_rg, x_rg)), "identity copy mismatch (fallback path)"

    print("KERNEL_OK")
</pallas_src>

<mosaic_0001>
module attributes {stable_mosaic.version = 11 : i64} {
  func.func @_copy_kernel(%arg0: i32, %arg1: memref<4x512xf32, #tpu.memory_space<vmem>>, %arg2: memref<4x512xf32, #tpu.memory_space<vmem>>) attributes {dimension_semantics = [#tpu.dimension_semantics<parallel>], iteration_bounds = array<i64: 1>, scalar_prefetch = 0 : i64, scratch_operands = 0 : i64, tpu.core_type = #tpu.core_type<tc>, window_params = [{transform_indices = @transform_0, window_bounds = array<i64: 4, 512>}, {transform_indices = @transform_1, window_bounds = array<i64: 4, 512>}]} {
    %c0 = arith.constant 0 : index
    %c0_0 = arith.constant 0 : index
    %0 = vector.load %arg1[%c0, %c0_0] : memref<4x512xf32, #tpu.memory_space<vmem>>, vector<4x512xf32>
    %c0_1 = arith.constant 0 : index
    %c0_2 = arith.constant 0 : index
    %1 = vector.load %arg2[%c0_1, %c0_2] : memref<4x512xf32, #tpu.memory_space<vmem>>, vector<4x512xf32>
    tpu.vector_store %arg2[%c0_1, %c0_2], %0 {strides = array<i32>} : memref<4x512xf32, #tpu.memory_space<vmem>>, vector<4x512xf32>,
    return
  }
  func.func @transform_0(%arg0: i32) -> (i32, i32) {
    %c0_i32 = arith.constant 0 : i32
    %c0_i32_0 = arith.constant 0 : i32
    return %arg0, %c0_i32 : i32, i32
  }
  func.func @transform_1(%arg0: i32) -> (i32, i32) {
    %c0_i32 = arith.constant 0 : i32
    %c0_i32_0 = arith.constant 0 : i32
    return %arg0, %c0_i32 : i32, i32
  }
}

</mosaic_0001>

<llo_original>
// kernel: pallas_identity_copy.1
$region0: #{pallas_identity_copy.1}
  #allocation0 [shape = 'u32[]', space=smem, size = 0x4, offset = 0x4, fixed_abs, tag = 'smem constant byte address 0x4 - core index']
  #allocation1 [shape = 'u32[72,128]{1,0:T(1,128)}', space=vmem, size = 0x9000, scoped, tag = 'internal scratch']
  %s0 = inlined_call_operand.vmem [shape: f32[4,512], index: 0, kind: input, shape index: {}]
  %s1 = inlined_call_operand.vmem [shape: f32[4,512], index: 1, kind: output, shape index: {}]
  %s2 = sld [smem:[#allocation0]]
  $region14: #{pallas_identity_copy.1} parent=0
    _
  %s4 = ssub.s32 1, %s2
  %s5 = scalar_select 0, %s4, %s2
  // Predicated region
  $region2: #{pallas_identity_copy.1} parent=0 // pred_check
    _
  $region3: #{pallas_identity_copy.1} parent=0 // pred_check_branch
    %7 = sbr.rel (0) target = $region5
  $region4: #{pallas_identity_copy.1} parent=0 // pred_region
    _
  $region5: #{pallas_identity_copy.1} parent=0 // pred_fallthru
    _
  %v8 = vld [vmem:[%s0] sm:$0xff]
  %v9 = vld [vmem:[%s0 + $0x8] sm:$0xff]
  %10 = vst [vmem:[%s1] sm:$0xff] %v8
  %11 = vst [vmem:[%s1 + $0x8] sm:$0xff] %v9
  // Predicated region
  $region6: #{pallas_identity_copy.1} parent=0 // pred_check
    _
  $region7: #{pallas_identity_copy.1} parent=0 // pred_check_branch
    %13 = sbr.rel (0) target = $region9
  $region8: #{pallas_identity_copy.1} parent=0 // pred_region
    _
  $region9: #{pallas_identity_copy.1} parent=0 // pred_fallthru
    _
  // Predicated region
  $region10: #{pallas_identity_copy.1} parent=0 // pred_check
    _
  $region11: #{pallas_identity_copy.1} parent=0 // pred_check_branch
    %15 = sbr.rel (0) target = $region13
  $region12: #{pallas_identity_copy.1} parent=0 // pred_region
    _
  $region13: #{pallas_identity_copy.1} parent=0 // pred_fallthru
    _

</llo_original>
